<compile_context>
chip_gen: v7x
topology: tpu7x:2x2x1
jax: 0.10.0
libtpu: 0.0.40
codegen_flags: <defaults>
</compile_context>

<pallas_src>
from functools import partial

import jax
import jax.numpy as jnp
from jax.experimental import pallas as pl
from jax.experimental.pallas import tpu as pltpu


def _round_up(x: int, m: int) -> int:
    return ((x + m - 1) // m) * m


def _eos_scatter_kernel(y_ref, ly_ref, target_ref, *, eos):
    """target = right-zero-padded y with eos written at column ly[n]."""
    y_pad = y_ref[...]                                           # (TN, U+1) int32, column U is 0
    col = jax.lax.broadcasted_iota(jnp.int32, y_pad.shape, 1)    # lane index
    target_ref[...] = jnp.where(col == ly_ref[...], jnp.int32(eos), y_pad)


def _choose_block_rows(n_rows: int, width: int,
                       target_block_bytes: int = 2 * 1024 * 1024,
                       vmem_budget_bytes: int = 12 * 1024 * 1024) -> int:
    """Rows per grid step.

    Constraints:
      * multiple of 8 (sublane tiling), unless the block covers all rows
        (full-extent blocks are always legal);
      * per-tile bytes ~= target_block_bytes (1-2 MiB tiles amortize the
        ~0.35 us per-step pipeline overhead, ~85% of HBM roofline);
      * double-buffered footprint (~4 tile buffers: input + output, x2) stays
        under vmem_budget_bytes, sized against v5e's 16 MiB default scoped
        VMEM (v6e/v7x defaults are 32 MiB, so also safe);
      * when n_rows >= 16, at most ~half the rows so the batch grid has >= 2
        steps and ("parallel",) can split it across v7x's two TensorCores.
    """
    row_bytes = 4 * width
    tn = min(target_block_bytes // row_bytes,
             vmem_budget_bytes // (4 * row_bytes))
    tn = max(8, (tn // 8) * 8)
    if n_rows >= 16:
        half = max(8, ((_round_up(n_rows, 8) // 2) // 8) * 8)
        tn = min(tn, half)
    if tn >= n_rows:
        tn = n_rows  # single block covering every row (full-dim block is legal)
    return tn


def seq_extractor(y, ly=None, *, bos, eos):
    """Equivalent of SeqExtractor.forward (return_pad=True, return_target=True)."""
    y = y.astype(jnp.int32)
    N, U = y.shape
    W = U + 1

    # ypad = [bos, y0, ..., y_{U-1}]: constant pad with no data dependence ->
    # emitted by XLA (fuses into consumers) instead of paying kernel bandwidth.
    ypad = jnp.pad(y, ((0, 0), (1, 0)), constant_values=bos)

    if ly is None:
        # PyTorch path: target[:, -1] = eos  <=>  scatter at column U for all rows.
        ly = jnp.full((N,), U, dtype=jnp.int32)
    ly = ly.astype(jnp.int32).reshape(N, 1)

    # Single zero column on the right; output is produced at its final
    # (N, U+1) shape so there is no post-kernel slicing.
    y_pad = jnp.pad(y, ((0, 0), (0, 1)))

    TN = _choose_block_rows(N, W)
    grid = (pl.cdiv(N, TN),)

    # read y_pad + ly, write target
    bytes_accessed = 4 * (N * W * 2 + N)

    target = pl.pallas_call(
        partial(_eos_scatter_kernel, eos=eos),
        grid=grid,
        in_specs=[
            pl.BlockSpec((TN, W), lambda i: (i, 0)),
            pl.BlockSpec((TN, 1), lambda i: (i, 0)),
        ],
        out_specs=pl.BlockSpec((TN, W), lambda i: (i, 0)),
        out_shape=jax.ShapeDtypeStruct((N, W), jnp.int32),
        compiler_params=pltpu.CompilerParams(
            dimension_semantics=("parallel",),
        ),
        cost_estimate=pl.CostEstimate(
            flops=0, transcendentals=0, bytes_accessed=bytes_accessed),
    )(y_pad, ly)

    return ypad, target


def _reference(y, ly, bos, eos):
    """Pure-jnp reference mirroring the PyTorch module."""
    N, U = y.shape
    ypad = jnp.concatenate([jnp.full((N, 1), bos, jnp.int32), y], axis=1)
    target = jnp.concatenate([y, jnp.zeros((N, 1), jnp.int32)], axis=1)
    if ly is None:
        target = target.at[:, -1].set(eos)
    else:
        target = target.at[jnp.arange(N), ly].set(eos)
    return ypad, target


if __name__ == "__main__":
    BOS, EOS = 1, 2
    key = jax.random.PRNGKey(0)

    # (N=2, U=8): single full-extent block.  (24, 37): 3-step tiled grid.
    # (20, 33): tiled grid with a ragged (masked) last row block.
    for (N, U) in [(2, 8), (24, 37), (20, 33)]:
        ky, kl, key = jax.random.split(key, 3)
        y = jax.random.randint(ky, (N, U), minval=3, maxval=100, dtype=jnp.int32)
        ly = jax.random.randint(kl, (N,), minval=1, maxval=U + 1, dtype=jnp.int32)

        # explicit lengths
        ypad, target = seq_extractor(y, ly, bos=BOS, eos=EOS)
        jax.block_until_ready((ypad, target))
        ypad_r, target_r = _reference(y, ly, BOS, EOS)
        assert jnp.array_equal(ypad, ypad_r), f"ypad mismatch N={N} U={U}"
        assert jnp.array_equal(target, target_r), f"target mismatch N={N} U={U}"

        # ly is None path (eos in last column)
        ypad2, target2 = seq_extractor(y, None, bos=BOS, eos=EOS)
        jax.block_until_ready((ypad2, target2))
        ypad2_r, target2_r = _reference(y, None, BOS, EOS)
        assert jnp.array_equal(ypad2, ypad2_r), f"ypad mismatch (ly=None) N={N} U={U}"
        assert jnp.array_equal(target2, target2_r), f"target mismatch (ly=None) N={N} U={U}"

    print("KERNEL_OK")
</pallas_src>

<mosaic_0001>
module attributes {stable_mosaic.version = 11 : i64} {
  func.func @_eos_scatter_kernel(%arg0: i32, %arg1: memref<2x9xi32, #tpu.memory_space<vmem>>, %arg2: memref<2x1xi32, #tpu.memory_space<vmem>>, %arg3: memref<2x9xi32, #tpu.memory_space<vmem>>) attributes {dimension_semantics = [#tpu.dimension_semantics<parallel>], iteration_bounds = array<i64: 1>, scalar_prefetch = 0 : i64, scratch_operands = 0 : i64, tpu.core_type = #tpu.core_type<tc>, window_params = [{transform_indices = @transform_0, window_bounds = array<i64: 2, 9>}, {transform_indices = @transform_1, window_bounds = array<i64: 2, 1>}, {transform_indices = @transform_2, window_bounds = array<i64: 2, 9>}]} {
    %c0 = arith.constant 0 : index
    %c0_0 = arith.constant 0 : index
    %0 = vector.load %arg1[%c0, %c0_0] : memref<2x9xi32, #tpu.memory_space<vmem>>, vector<2x9xi32>
    %1 = tpu.iota {dimensions = array<i32: 1>} : vector<2x9xi32>
    %c0_1 = arith.constant 0 : index
    %c0_2 = arith.constant 0 : index
    %2 = vector.load %arg2[%c0_1, %c0_2] : memref<2x1xi32, #tpu.memory_space<vmem>>, vector<2x1xi32>
    %3 = vector.broadcast %2 : vector<2x1xi32> to vector<2x9xi32>
    %4 = arith.cmpi eq, %1, %3 : vector<2x9xi32>
    %c2_i32 = arith.constant 2 : i32
    %5 = vector.broadcast %c2_i32 : i32 to vector<2x9xi32>
    %6 = arith.select %4, %5, %0 : vector<2x9xi1>, vector<2x9xi32>
    %c0_3 = arith.constant 0 : index
    %c0_4 = arith.constant 0 : index
    %7 = vector.load %arg3[%c0_3, %c0_4] : memref<2x9xi32, #tpu.memory_space<vmem>>, vector<2x9xi32>
    tpu.vector_store %arg3[%c0_3, %c0_4], %6 {strides = array<i32>} : memref<2x9xi32, #tpu.memory_space<vmem>>, vector<2x9xi32>,
    return
  }
  func.func @transform_0(%arg0: i32) -> (i32, i32) {
    %c0_i32 = arith.constant 0 : i32
    %c0_i32_0 = arith.constant 0 : i32
    return %arg0, %c0_i32 : i32, i32
  }
  func.func @transform_1(%arg0: i32) -> (i32, i32) {
    %c0_i32 = arith.constant 0 : i32
    %c0_i32_0 = arith.constant 0 : i32
    return %arg0, %c0_i32 : i32, i32
  }
  func.func @transform_2(%arg0: i32) -> (i32, i32) {
    %c0_i32 = arith.constant 0 : i32
    %c0_i32_0 = arith.constant 0 : i32
    return %arg0, %c0_i32 : i32, i32
  }
}

</mosaic_0001>

<llo_original>
// kernel: tpu_custom_call.1
$region0: #{tpu_custom_call.1}
  #allocation0 [shape = 'u32[]', space=smem, size = 0x4, offset = 0x4, fixed_abs, tag = 'smem constant byte address 0x4 - core index']
  #allocation1 [shape = 'u32[144,128]{1,0:T(1,128)}', space=vmem, size = 0x12000, scoped, tag = 'internal scratch']
  %s0 = inlined_call_operand.vmem [shape: s32[2,9], index: 0, kind: input, shape index: {}]
  %s1 = inlined_call_operand.vmem [shape: s32[2,1], index: 1, kind: input, shape index: {}]
  %s2 = inlined_call_operand.hbm [shape: s32[2,9], index: 2, kind: output, shape index: {}]
  %s3 = sld [smem:[#allocation0]]
  $region18: #{tpu_custom_call.1} parent=0
    _
  %s5 = ssub.s32 1, %s3
  %s6 = scalar_select 0, %s5, %s3
  $region1: #{tpu_custom_call.1} parent=0
    #allocation2 [shape = 'u8[1024]{0}', space=vmem, size = 0x400, scoped, tag = 'output window, operand 0, single buffered']
    #allocation3 [shape = 's32[1]{0}', space=sflag, size = 0x4, scoped, tag = 'scoped memory for tpu_custom_call.1']
    %7 = vsyncpa [#allocation3], 0
    // Predicated region
    $region2: #{tpu_custom_call.1} parent=1 // pred_check
      _
    $region3: #{tpu_custom_call.1} parent=1 // pred_check_branch
      %9 = sbr.rel (0) target = $region5
    $region4: #{tpu_custom_call.1} parent=1 // pred_region
      _
    $region5: #{tpu_custom_call.1} parent=1 // pred_fallthru
      _
    // Predicated region
    $region6: #{tpu_custom_call.1} parent=1 // pred_check
      _
    $region7: #{tpu_custom_call.1} parent=1 // pred_check_branch
      %11 = sbr.rel (0) target = $region9
    $region8: #{tpu_custom_call.1} parent=1 // pred_region
      _
    $region9: #{tpu_custom_call.1} parent=1 // pred_fallthru
      _
    %v12 = vld [vmem:[%s0] sm:$0x3]
    %v13 = vlaneseq
    %v14 = vand.u32 %v13, 127
    %v15 = vld [vmem:[%s1] sm:$0x3]
    %16 = vset.pattern.permute.xlu0 0
    %17 = vperm.xlu0 %16, %v15
    %v18 = vpop.permute.xlu0 %17
    %vm19 = vcmp.eq.s32.totalorder %v14, %v18
    %v20 = vsel %vm19, 2, %v12
    %vm21 = vcmask 66560
    %22 = vst.msk [vmem:[#allocation2] sm:$0x3] %vm21, %v20
    // Predicated region
    $region10: #{tpu_custom_call.1} parent=1 // pred_check
      _
    $region11: #{tpu_custom_call.1} parent=1 // pred_check_branch
      %24 = sbr.rel (0) target = $region13
    $region12: #{tpu_custom_call.1} parent=1 // pred_region
      %s26 = ssub.s32 32, 32
      %27 = vsyncadd [#allocation3], %s26
      %s29 = sshll.u32 [#allocation2], 4
      %s30 = int_to_ptr.vmem [resolvable:$true] %s29
      %32 = dma.vmem_to_hbm [thread:$0]  %s30, 32, %s2, [#allocation3]
    $region13: #{tpu_custom_call.1} parent=1 // pred_fallthru
      _
    // Predicated region
    $region14: #{tpu_custom_call.1} parent=1 // pred_check
      _
    $region15: #{tpu_custom_call.1} parent=1 // pred_check_branch
      %34 = sbr.rel (0) target = $region17
    $region16: #{tpu_custom_call.1} parent=1 // pred_region
      %35 = dma.done [#allocation3], 32
    $region17: #{tpu_custom_call.1} parent=1 // pred_fallthru
      _
    %36 = vsyncpa [#allocation3], 1

</llo_original>
